<compile_context>
chip_gen: v5e
topology: v5e:2x2
jax: 0.10.0
libtpu: 0.0.40
codegen_flags: <defaults>
</compile_context>

<pallas_src>
import functools

import jax
import jax.numpy as jnp
from jax.experimental import pallas as pl
from jax.experimental.pallas import tpu as pltpu

_LANE = 128
_SUBLANE = 8


def _round_up(n, m):
    return ((n + m - 1) // m) * m


# ----------------------------------------------------------------------------
# Kernel
# ----------------------------------------------------------------------------
def _coagent_kernel(num_layers, greedy, c_pad, ncls_pad, *refs):
    """Fused coagent forward for one batch tile.

    Ref order (inputs):
      x [tb, F_pad],
      (if not greedy) u_0..u_{L-1}  each [tb, C_pad],
      Wd_0..Wd_{L-1}  ([in_pad, C_pad], already W_even - W_odd, transposed),
      Wl [C_pad, NCLS_pad],
      bias_all [L+1, max(C_pad, NCLS_pad)]  (rows 0..L-1 = bd_i, row L = bl)
    Ref order (outputs):
      logits [tb, NCLS_pad], s_0..s_{L-1} (each [tb, C_pad])
    """
    idx = 0
    x_ref = refs[idx]; idx += 1
    u_refs = []
    if not greedy:
        u_refs = refs[idx:idx + num_layers]; idx += num_layers
    wd_refs = refs[idx:idx + num_layers]; idx += num_layers
    wl_ref = refs[idx]; idx += 1
    bias_ref = refs[idx]; idx += 1
    logits_ref = refs[idx]; idx += 1
    state_refs = refs[idx:idx + num_layers]

    bias = bias_ref[...]                       # [L+1, W], tiny, load once
    state = x_ref[...]                         # [tb, F_pad] f32

    for i in range(num_layers):
        # d = z0 - z1 for every coagent: single MXU pass per layer.
        d = jnp.dot(state, wd_refs[i][...], preferred_element_type=jnp.float32)
        d = d + bias[i:i + 1, :c_pad]
        if greedy:
            # argmax over {p0, p1}: class 1 iff p1 > p0 iff d < 0 (tie -> 0)
            new_state = (d < 0.0).astype(jnp.float32)
        else:
            # p0 = softmax(z)[..., 0] = sigmoid(z0 - z1); sample = 1 iff u >= p0
            new_state = (u_refs[i][...] >= jax.nn.sigmoid(d)).astype(jnp.float32)
        state_refs[i][...] = new_state
        state = new_state

    logits = jnp.dot(state, wl_ref[...], preferred_element_type=jnp.float32)
    logits_ref[...] = logits + bias[num_layers:num_layers + 1, :ncls_pad]


# ----------------------------------------------------------------------------
# One-time parameter preparation (hoisted out of the per-call hot path)
# ----------------------------------------------------------------------------
def prepare_coagent_params(weights, biases, *, num_coagents, num_classes):
    """Fold even/odd heads into difference weights and zero-pad to lane-dense
    shapes.  Call once when parameters change, not per forward."""
    num_layers = len(weights) - 1
    C = num_coagents
    C_pad = _round_up(C, _LANE)
    NCLS_pad = _round_up(num_classes, _LANE)
    F = weights[0].shape[1]
    F_pad = _round_up(F, _LANE)
    bias_w = max(C_pad, NCLS_pad)

    in_pads = [F_pad] + [C_pad] * (num_layers - 1)

    wd_list = []
    bias_rows = []
    for i in range(num_layers):
        W = jnp.asarray(weights[i], jnp.float32)          # [2C, in] (torch layout)
        b = jnp.asarray(biases[i], jnp.float32)           # [2C]
        Wd = (W[0::2, :] - W[1::2, :]).T                  # [in, C]  (z0 - z1 head)
        bd = b[0::2] - b[1::2]                            # [C]
        in_dim = W.shape[1]
        Wd_p = jnp.zeros((in_pads[i], C_pad), jnp.float32).at[:in_dim, :C].set(Wd)
        wd_list.append(Wd_p)
        bias_rows.append(jnp.zeros((bias_w,), jnp.float32).at[:C].set(bd))

    Wl = jnp.asarray(weights[-1], jnp.float32).T          # [C, NCLS]
    bl = jnp.asarray(biases[-1], jnp.float32)             # [NCLS]
    Wl_p = jnp.zeros((C_pad, NCLS_pad), jnp.float32).at[:C, :num_classes].set(Wl)
    bias_rows.append(jnp.zeros((bias_w,), jnp.float32).at[:num_classes].set(bl))

    return {
        "num_layers": num_layers,
        "C": C, "C_pad": C_pad,
        "num_classes": num_classes, "NCLS_pad": NCLS_pad,
        "F": F, "F_pad": F_pad,
        "wd_list": wd_list,
        "Wl": Wl_p,
        "bias_all": jnp.stack(bias_rows, axis=0),         # [L+1, bias_w]
    }


# ----------------------------------------------------------------------------
# Forward wrapper
# ----------------------------------------------------------------------------
def coagent_forward(x, uniforms, params, *, greedy=False, block_b=256):
    """Run the fused GeneralCoagent forward.

    x        : [B, F] float32
    uniforms : list of L arrays [B, C] in [0,1)  (ignored / may be None if greedy)
    params   : output of prepare_coagent_params
    Returns (logits [B, num_classes], states list of L arrays [B, C]).
    """
    L = params["num_layers"]
    C, C_pad = params["C"], params["C_pad"]
    NCLS, NCLS_pad = params["num_classes"], params["NCLS_pad"]
    F, F_pad = params["F"], params["F_pad"]

    B = x.shape[0]
    tb = block_b if B >= block_b else _round_up(B, _SUBLANE)
    B_pad = _round_up(B, tb)
    grid = (B_pad // tb,)

    # ---- per-call inputs (zero-padded to lane-dense shapes) ---------------
    x_p = jnp.zeros((B_pad, F_pad), jnp.float32).at[:B, :F].set(
        x.astype(jnp.float32))
    kernel_inputs = [x_p]
    in_specs = [pl.BlockSpec((tb, F_pad), lambda i: (i, 0))]

    if not greedy:
        for i in range(L):
            u_p = jnp.zeros((B_pad, C_pad), jnp.float32).at[:B, :C].set(
                uniforms[i].astype(jnp.float32))
            kernel_inputs.append(u_p)
            in_specs.append(pl.BlockSpec((tb, C_pad), lambda i: (i, 0)))

    # weights/biases: constant index_map -> fetched once, resident across grid
    for Wd in params["wd_list"]:
        kernel_inputs.append(Wd)
        in_specs.append(pl.BlockSpec(Wd.shape, lambda i: (0, 0)))
    kernel_inputs.append(params["Wl"])
    in_specs.append(pl.BlockSpec(params["Wl"].shape, lambda i: (0, 0)))
    kernel_inputs.append(params["bias_all"])
    in_specs.append(pl.BlockSpec(params["bias_all"].shape, lambda i: (0, 0)))

    out_shapes = [jax.ShapeDtypeStruct((B_pad, NCLS_pad), jnp.float32)] + [
        jax.ShapeDtypeStruct((B_pad, C_pad), jnp.float32) for _ in range(L)
    ]
    out_specs = [pl.BlockSpec((tb, NCLS_pad), lambda i: (i, 0))] + [
        pl.BlockSpec((tb, C_pad), lambda i: (i, 0)) for _ in range(L)
    ]

    kernel = functools.partial(_coagent_kernel, L, greedy, C_pad, NCLS_pad)

    outs = pl.pallas_call(
        kernel,
        out_shape=tuple(out_shapes),
        grid_spec=pltpu.PrefetchScalarGridSpec(
            num_scalar_prefetch=0,
            grid=grid,
            in_specs=in_specs,
            out_specs=tuple(out_specs),
        ),
        compiler_params=pltpu.CompilerParams(
            dimension_semantics=("parallel",)),
    )(*kernel_inputs)

    logits = outs[0][:B, :NCLS]
    states = [o[:B, :C] for o in outs[1:]]
    return logits, states


# ----------------------------------------------------------------------------
# Pure-JAX reference (mirrors the PyTorch module semantics)
# ----------------------------------------------------------------------------
def coagent_reference(x, uniforms, weights, biases, *, num_coagents, greedy=False):
    num_layers = len(weights) - 1
    C = num_coagents
    state = x.astype(jnp.float32)
    states = []
    for i in range(num_layers):
        z = state @ weights[i].T + biases[i]                 # [B, 2C]
        z = z.reshape(-1, C, 2)
        p = jax.nn.softmax(z, axis=2)                        # [B, C, 2]
        if greedy:
            state = jnp.argmax(p, axis=2).astype(jnp.float32)
        else:
            state = (uniforms[i] >= p[..., 0]).astype(jnp.float32)
        states.append(state)
    logits = states[-1] @ weights[-1].T + biases[-1]
    return logits, states


# ----------------------------------------------------------------------------
# Main
# ----------------------------------------------------------------------------
if __name__ == "__main__":
    def run_case(B, F, C, NCLS, L, seed):
        key = jax.random.PRNGKey(seed)
        keys = jax.random.split(key, 2 * (L + 1) + 2)

        # Deterministic synthetic param init (PyTorch Linear shapes: [out, in]).
        weights, biases = [], []
        in_dims = [F] + [C] * L
        out_dims = [2 * C] * L + [NCLS]
        for i in range(L + 1):
            bound = 1.0 / jnp.sqrt(in_dims[i])
            W = jax.random.uniform(keys[2 * i], (out_dims[i], in_dims[i]),
                                   jnp.float32, -bound, bound)
            b = jax.random.uniform(keys[2 * i + 1], (out_dims[i],),
                                   jnp.float32, -bound, bound)
            weights.append(W)
            biases.append(b)

        x = jax.random.normal(keys[-2], (B, F), jnp.float32)
        ukeys = jax.random.split(keys[-1], L)
        uniforms = [jax.random.uniform(ukeys[i], (B, C), jnp.float32)
                    for i in range(L)]

        params = prepare_coagent_params(
            weights, biases, num_coagents=C, num_classes=NCLS)

        # --- stochastic path (forward default: greedy=False) ---------------
        logits, states = coagent_forward(x, uniforms, params, greedy=False)
        logits = jax.block_until_ready(logits)
        states = [jax.block_until_ready(s) for s in states]
        ref_logits, ref_states = coagent_reference(
            x, uniforms, weights, biases, num_coagents=C, greedy=False)
        assert jnp.allclose(logits, ref_logits, atol=1e-5, rtol=1e-5)
        for s, rs in zip(states, ref_states):
            assert jnp.array_equal(s, rs)

        # --- greedy path (uniforms not passed into the kernel) --------------
        g_logits, g_states = coagent_forward(x, None, params, greedy=True)
        g_logits = jax.block_until_ready(g_logits)
        rg_logits, rg_states = coagent_reference(
            x, uniforms, weights, biases, num_coagents=C, greedy=True)
        assert jnp.allclose(g_logits, rg_logits, atol=1e-5, rtol=1e-5)
        for s, rs in zip(g_states, rg_states):
            assert jnp.array_equal(s, rs)

    # Small shapes consistent with the module:
    #   in_features=[32], num_classes=4, num_coagents=8
    run_case(B=8, F=32, C=8, NCLS=4, L=1, seed=0)   # num_layers = 1
    run_case(B=16, F=32, C=8, NCLS=4, L=2, seed=1)  # num_layers = 2 (hidden layer path)

    print("KERNEL_OK")
</pallas_src>

<mosaic_0001>
module attributes {stable_mosaic.version = 11 : i64} {
  func.func @_coagent_kernel(%arg0: i32, %arg1: memref<8x128xf32, #tpu.memory_space<vmem>>, %arg2: memref<8x128xf32, #tpu.memory_space<vmem>>, %arg3: memref<128x128xf32, #tpu.memory_space<vmem>>, %arg4: memref<128x128xf32, #tpu.memory_space<vmem>>, %arg5: memref<2x128xf32, #tpu.memory_space<vmem>>, %arg6: memref<8x128xf32, #tpu.memory_space<vmem>>, %arg7: memref<8x128xf32, #tpu.memory_space<vmem>>) attributes {dimension_semantics = [#tpu.dimension_semantics<parallel>], iteration_bounds = array<i64: 1>, scalar_prefetch = 0 : i64, scratch_operands = 0 : i64, tpu.core_type = #tpu.core_type<tc>, window_params = [{transform_indices = @transform_0, window_bounds = array<i64: 8, 128>}, {transform_indices = @transform_1, window_bounds = array<i64: 8, 128>}, {pipeline_mode = #tpu.pipeline_mode<synchronous>, transform_indices = @transform_2, window_bounds = array<i64: 128, 128>}, {pipeline_mode = #tpu.pipeline_mode<synchronous>, transform_indices = @transform_3, window_bounds = array<i64: 128, 128>}, {pipeline_mode = #tpu.pipeline_mode<synchronous>, transform_indices = @transform_4, window_bounds = array<i64: 2, 128>}, {transform_indices = @transform_5, window_bounds = array<i64: 8, 128>}, {transform_indices = @transform_6, window_bounds = array<i64: 8, 128>}]} {
    %c0 = arith.constant 0 : index
    %c0_0 = arith.constant 0 : index
    %0 = vector.load %arg5[%c0, %c0_0] : memref<2x128xf32, #tpu.memory_space<vmem>>, vector<2x128xf32>
    %c0_1 = arith.constant 0 : index
    %c0_2 = arith.constant 0 : index
    %1 = vector.load %arg1[%c0_1, %c0_2] : memref<8x128xf32, #tpu.memory_space<vmem>>, vector<8x128xf32>
    %c0_3 = arith.constant 0 : index
    %c0_4 = arith.constant 0 : index
    %2 = vector.load %arg3[%c0_3, %c0_4] : memref<128x128xf32, #tpu.memory_space<vmem>>, vector<128x128xf32>
    %cst = arith.constant dense<0.000000e+00> : vector<8x128xf32>
    %3 = tpu.matmul %1, %2, %cst {dimension_numbers = #tpu.dot_dimension_numbers<[1], [0], [0], [1], [0, 0, 1, 1], [], []>} : vector<8x128xf32>, vector<128x128xf32>, vector<8x128xf32> -> vector<8x128xf32>
    %4 = vector.extract_strided_slice %0 {offsets = [0, 0], sizes = [1, 128], strides = [1, 1]} : vector<2x128xf32> to vector<1x128xf32>
    %5 = vector.broadcast %4 : vector<1x128xf32> to vector<8x128xf32>
    %6 = arith.addf %3, %5 : vector<8x128xf32>
    %c0_5 = arith.constant 0 : index
    %c0_6 = arith.constant 0 : index
    %7 = vector.load %arg2[%c0_5, %c0_6] : memref<8x128xf32, #tpu.memory_space<vmem>>, vector<8x128xf32>
    %8 = arith.negf %6 : vector<8x128xf32>
    %9 = math.exp %8 : vector<8x128xf32>
    %cst_7 = arith.constant 1.000000e+00 : f32
    %10 = vector.broadcast %cst_7 : f32 to vector<8x128xf32>
    %11 = arith.addf %10, %9 : vector<8x128xf32>
    %12 = arith.divf %10, %11 : vector<8x128xf32>
    %13 = arith.cmpf oge, %7, %12 : vector<8x128xf32>
    %14 = arith.extui %13 : vector<8x128xi1> to vector<8x128xi32>
    %15 = arith.sitofp %14 : vector<8x128xi32> to vector<8x128xf32>
    %c0_8 = arith.constant 0 : index
    %c0_9 = arith.constant 0 : index
    %16 = vector.load %arg7[%c0_8, %c0_9] : memref<8x128xf32, #tpu.memory_space<vmem>>, vector<8x128xf32>
    tpu.vector_store %arg7[%c0_8, %c0_9], %15 {strides = array<i32>} : memref<8x128xf32, #tpu.memory_space<vmem>>, vector<8x128xf32>,
    %c0_10 = arith.constant 0 : index
    %c0_11 = arith.constant 0 : index
    %17 = vector.load %arg4[%c0_10, %c0_11] : memref<128x128xf32, #tpu.memory_space<vmem>>, vector<128x128xf32>
    %cst_12 = arith.constant dense<0.000000e+00> : vector<8x128xf32>
    %18 = tpu.matmul %15, %17, %cst_12 {dimension_numbers = #tpu.dot_dimension_numbers<[1], [0], [0], [1], [0, 0, 1, 1], [], []>} : vector<8x128xf32>, vector<128x128xf32>, vector<8x128xf32> -> vector<8x128xf32>
    %19 = vector.extract_strided_slice %0 {offsets = [1, 0], sizes = [1, 128], strides = [1, 1]} : vector<2x128xf32> to vector<1x128xf32>
    %20 = vector.broadcast %19 : vector<1x128xf32> to vector<8x128xf32>
    %21 = arith.addf %18, %20 : vector<8x128xf32>
    %c0_13 = arith.constant 0 : index
    %c0_14 = arith.constant 0 : index
    %22 = vector.load %arg6[%c0_13, %c0_14] : memref<8x128xf32, #tpu.memory_space<vmem>>, vector<8x128xf32>
    tpu.vector_store %arg6[%c0_13, %c0_14], %21 {strides = array<i32>} : memref<8x128xf32, #tpu.memory_space<vmem>>, vector<8x128xf32>,
    return
  }
  func.func @transform_0(%arg0: i32) -> (i32, i32) {
    %c0_i32 = arith.constant 0 : i32
    %c0_i32_0 = arith.constant 0 : i32
    return %arg0, %c0_i32 : i32, i32
  }
  func.func @transform_1(%arg0: i32) -> (i32, i32) {
    %c0_i32 = arith.constant 0 : i32
    %c0_i32_0 = arith.constant 0 : i32
    return %arg0, %c0_i32 : i32, i32
  }
  func.func @transform_2(%arg0: i32) -> (i32, i32) {
    %c0_i32 = arith.constant 0 : i32
    %c0_i32_0 = arith.constant 0 : i32
    %c0_i32_1 = arith.constant 0 : i32
    return %c0_i32, %c0_i32_0 : i32, i32
  }
  func.func @transform_3(%arg0: i32) -> (i32, i32) {
    %c0_i32 = arith.constant 0 : i32
    %c0_i32_0 = arith.constant 0 : i32
    %c0_i32_1 = arith.constant 0 : i32
    return %c0_i32, %c0_i32_0 : i32, i32
  }
  func.func @transform_4(%arg0: i32) -> (i32, i32) {
    %c0_i32 = arith.constant 0 : i32
    %c0_i32_0 = arith.constant 0 : i32
    %c0_i32_1 = arith.constant 0 : i32
    return %c0_i32, %c0_i32_0 : i32, i32
  }
  func.func @transform_5(%arg0: i32) -> (i32, i32) {
    %c0_i32 = arith.constant 0 : i32
    %c0_i32_0 = arith.constant 0 : i32
    return %arg0, %c0_i32 : i32, i32
  }
  func.func @transform_6(%arg0: i32) -> (i32, i32) {
    %c0_i32 = arith.constant 0 : i32
    %c0_i32_0 = arith.constant 0 : i32
    return %arg0, %c0_i32 : i32, i32
  }
}

</mosaic_0001>

<llo_original>
// kernel: tpu_custom_call.1
$region0: #{tpu_custom_call.1}
  #allocation0 [shape = 'u32[]', space=smem, size = 0x4, offset = 0x4, fixed_abs, tag = 'smem constant byte address 0x4 - core index']
  #allocation1 [shape = 'u32[72,128]{1,0:T(1,128)}', space=vmem, size = 0x9000, scoped, tag = 'internal scratch']
  %s0 = inlined_call_operand.hbm [shape: f32[8,128], index: 0, kind: input, shape index: {}]
  %s1 = inlined_call_operand.hbm [shape: f32[8,128], index: 1, kind: input, shape index: {}]
  %s2 = inlined_call_operand.hbm [shape: f32[128,128], index: 2, kind: input, shape index: {}]
  %s3 = inlined_call_operand.hbm [shape: f32[128,128], index: 3, kind: input, shape index: {}]
  %s4 = inlined_call_operand.vmem [shape: f32[2,128], index: 4, kind: input, shape index: {}]
  %s5 = inlined_call_operand.hbm [shape: f32[8,128], index: 5, kind: output, shape index: {0}]
  %s6 = inlined_call_operand.hbm [shape: f32[8,128], index: 6, kind: output, shape index: {1}]
  %7 = xla_tuple %s5, %s6
  %s8 = sld [smem:[#allocation0]]
  $region54: #{tpu_custom_call.1} parent=0
    _
  %s10 = ssub.s32 1, %s8
  %s11 = scalar_select 0, %s10, %s8
  $region1: #{tpu_custom_call.1} parent=0
    #allocation2 [shape = 'u8[4096]{0}', space=vmem, size = 0x1000, scoped, tag = 'input window, operand 0, single buffered']
    #allocation3 [shape = 's32[1]{0}', space=sflag, size = 0x4, scoped, tag = 'scoped memory for tpu_custom_call.1']
    #allocation4 [shape = 's32[1]{0}', space=sflag, size = 0x4, scoped, tag = 'scoped memory for tpu_custom_call.1']
    #allocation5 [shape = 'u8[4096]{0}', space=vmem, size = 0x1000, scoped, tag = 'input window, operand 1, single buffered']
    #allocation6 [shape = 's32[1]{0}', space=sflag, size = 0x4, scoped, tag = 'scoped memory for tpu_custom_call.1']
    #allocation7 [shape = 'u8[65536]{0}', space=vmem, size = 0x10000, scoped, tag = 'input window, operand 2, single buffered']
    #allocation8 [shape = 'u8[65536]{0}', space=vmem, size = 0x10000, scoped, tag = 'input window, operand 3, single buffered']
    #allocation9 [shape = 's32[1]{0}', space=sflag, size = 0x4, scoped, tag = 'scoped memory for tpu_custom_call.1']
    #allocation10 [shape = 'u8[4096]{0}', space=vmem, size = 0x1000, scoped, tag = 'output window, operand 0, single buffered']
    #allocation11 [shape = 'u8[4096]{0}', space=vmem, size = 0x1000, scoped, tag = 'output window, operand 1, single buffered']
    #allocation12 [shape = 's32[1]{0}', space=sflag, size = 0x4, scoped, tag = 'scoped memory for tpu_custom_call.1']
    %12 = vsyncpa [#allocation3], 0
    %13 = vsyncpa [#allocation6], 0
    %14 = vsyncpa [#allocation9], 0
    %15 = vsyncpa [#allocation4], 0
    %16 = vsyncpa [#allocation12], 0
    // Predicated region
    $region2: #{tpu_custom_call.1} parent=1 // pred_check
      _
    $region3: #{tpu_custom_call.1} parent=1 // pred_check_branch
      %18 = sbr.rel (0) target = $region5
    $region4: #{tpu_custom_call.1} parent=1 // pred_region
      %20 = vsyncadd [#allocation3], 0
      %s22 = sshll.u32 %s0, 4
      %s23 = int_to_ptr.hbm [resolvable:$true] %s22
      %s24 = sshll.u32 [#allocation2], 4
      %s25 = int_to_ptr.vmem [resolvable:$true] %s24
      %27 = dma.hbm_to_vmem [thread:$0]  %s23, 128, %s25, [#allocation3]
    $region5: #{tpu_custom_call.1} parent=1 // pred_fallthru
      _
    // Predicated region
    $region6: #{tpu_custom_call.1} parent=1 // pred_check
      _
    $region7: #{tpu_custom_call.1} parent=1 // pred_check_branch
      %29 = sbr.rel (0) target = $region9
    $region8: #{tpu_custom_call.1} parent=1 // pred_region
      %31 = vsyncadd [#allocation6], 0
      %s33 = sshll.u32 %s1, 4
      %s34 = int_to_ptr.hbm [resolvable:$true] %s33
      %s35 = sshll.u32 [#allocation5], 4
      %s36 = int_to_ptr.vmem [resolvable:$true] %s35
      %38 = dma.hbm_to_vmem [thread:$0]  %s34, 128, %s36, [#allocation6]
    $region9: #{tpu_custom_call.1} parent=1 // pred_fallthru
      _
    // Predicated region
    $region10: #{tpu_custom_call.1} parent=1 // pred_check
      _
    $region11: #{tpu_custom_call.1} parent=1 // pred_check_branch
      %40 = sbr.rel (0) target = $region13
    $region12: #{tpu_custom_call.1} parent=1 // pred_region
      %42 = vsyncadd [#allocation6], 0
      %s43 = sshll.u32 %s2, 4
      %s44 = int_to_ptr.hbm [resolvable:$true] %s43
      %s45 = sshll.u32 [#allocation7], 4
      %s46 = int_to_ptr.vmem [resolvable:$true] %s45
      %51 = dma.hbm_to_vmem [thread:$0]  %s44, 2048, %s46, [#allocation6], 128, 128, 8
    $region13: #{tpu_custom_call.1} parent=1 // pred_fallthru
      _
    // Predicated region
    $region14: #{tpu_custom_call.1} parent=1 // pred_check
      _
    $region15: #{tpu_custom_call.1} parent=1 // pred_check_branch
      %53 = sbr.rel (0) target = $region17
    $region16: #{tpu_custom_call.1} parent=1 // pred_region
      %55 = vsyncadd [#allocation9], 0
      %s56 = sshll.u32 %s3, 4
      %s57 = int_to_ptr.hbm [resolvable:$true] %s56
      %s58 = sshll.u32 [#allocation8], 4
      %s59 = int_to_ptr.vmem [resolvable:$true] %s58
      %64 = dma.hbm_to_vmem [thread:$0]  %s57, 2048, %s59, [#allocation9], 128, 128, 8
    $region17: #{tpu_custom_call.1} parent=1 // pred_fallthru
      _
    // Predicated region
    $region18: #{tpu_custom_call.1} parent=1 // pred_check
      _
    $region19: #{tpu_custom_call.1} parent=1 // pred_check_branch
      %66 = sbr.rel (0) target = $region21
    $region20: #{tpu_custom_call.1} parent=1 // pred_region
      _
    $region21: #{tpu_custom_call.1} parent=1 // pred_fallthru
      _
    // Predicated region
    $region22: #{tpu_custom_call.1} parent=1 // pred_check
      _
    $region23: #{tpu_custom_call.1} parent=1 // pred_check_branch
      %68 = sbr.rel (0) target = $region25
    $region24: #{tpu_custom_call.1} parent=1 // pred_region
      %70 = dma.done [#allocation3], 128
    $region25: #{tpu_custom_call.1} parent=1 // pred_fallthru
      _
    // Predicated region
    $region26: #{tpu_custom_call.1} parent=1 // pred_check
      _
    $region27: #{tpu_custom_call.1} parent=1 // pred_check_branch
      %72 = sbr.rel (0) target = $region29
    $region28: #{tpu_custom_call.1} parent=1 // pred_region
      %74 = dma.done [#allocation6], 128
    $region29: #{tpu_custom_call.1} parent=1 // pred_fallthru
      _
    // Predicated region
    $region30: #{tpu_custom_call.1} parent=1 // pred_check
      _
    $region31: #{tpu_custom_call.1} parent=1 // pred_check_branch
      %76 = sbr.rel (0) target = $region33
    $region32: #{tpu_custom_call.1} parent=1 // pred_region
      %78 = dma.done [#allocation6], 2048
    $region33: #{tpu_custom_call.1} parent=1 // pred_fallthru
      _
    // Predicated region
    $region34: #{tpu_custom_call.1} parent=1 // pred_check
      _
    $region35: #{tpu_custom_call.1} parent=1 // pred_check_branch
      %80 = sbr.rel (0) target = $region37
    $region36: #{tpu_custom_call.1} parent=1 // pred_region
      %82 = dma.done [#allocation9], 2048
    $region37: #{tpu_custom_call.1} parent=1 // pred_fallthru
      _
    %v83 = vld [vmem:[%s4] sm:$0x3]
    %v84 = vld [vmem:[#allocation2] sm:$0xff]
    %v85 = vld [vmem:[#allocation7] sm:$0xff]
    %v86 = vld [vmem:[#allocation7 + $0x8] sm:$0xff]
    %v87 = vld [vmem:[#allocation7 + $0x10] sm:$0xff]
    %v88 = vld [vmem:[#allocation7 + $0x18] sm:$0xff]
    %v89 = vld [vmem:[#allocation7 + $0x20] sm:$0xff]
    %v90 = vld [vmem:[#allocation7 + $0x28] sm:$0xff]
    %v91 = vld [vmem:[#allocation7 + $0x30] sm:$0xff]
    %v92 = vld [vmem:[#allocation7 + $0x38] sm:$0xff]
    %v93 = vld [vmem:[#allocation7 + $0x40] sm:$0xff]
    %v94 = vld [vmem:[#allocation7 + $0x48] sm:$0xff]
    %v95 = vld [vmem:[#allocation7 + $0x50] sm:$0xff]
    %v96 = vld [vmem:[#allocation7 + $0x58] sm:$0xff]
    %v97 = vld [vmem:[#allocation7 + $0x60] sm:$0xff]
    %v98 = vld [vmem:[#allocation7 + $0x68] sm:$0xff]
    %v99 = vld [vmem:[#allocation7 + $0x70] sm:$0xff]
    %v100 = vld [vmem:[#allocation7 + $0x78] sm:$0xff]
    %v101 = vperm.slane %v83, 0
    %102 = vmatpush.msra.mxu0 %v100
    %103 = vmatpush.msra.mxu0 %v99
    %104 = vmatpush.msra.mxu0 %v98
    %105 = vmatpush.msra.mxu0 %v97
    %106 = vmatpush.msra.mxu0 %v96
    %107 = vmatpush.msra.mxu0 %v95
    %108 = vmatpush.msra.mxu0 %v94
    %109 = vmatpush.msra.mxu0 %v93
    %110 = vmatpush.msra.mxu0 %v92
    %111 = vmatpush.msra.mxu0 %v91
    %112 = vmatpush.msra.mxu0 %v90
    %113 = vmatpush.msra.mxu0 %v89
    %114 = vmatpush.msra.mxu0 %v88
    %115 = vmatpush.msra.mxu0 %v87
    %116 = vmatpush.msra.mxu0 %v86
    %117 = vmatpush.msra.mxu0 %v85
    %118 = vmatmul.f32.gmra.mxu0 %v84
    %v119 = vpop.f32.mrf.mxu0
    %v120 = vadd.f32 %v101, %v119
    %121 = vdwg.mxu0
    %v122 = vld [vmem:[#allocation5] sm:$0xff]
    %v123 = vxor.u32 %v120, 2147483648
    %v124 = vmul.f32 %v123, 1.442695
    %v125 = vpow.pop %v124
    %v126 = vadd.f32 %v125, 1.0
    %v127 = vrcp.pop %v126
    %v128 = vmul.f32 %v126, %v127
    %v129 = vsub.f32 1.0, %v128
    %v130 = vmul.f32 %v127, %v129
    %v131 = vadd.f32 %v127, %v130
    %vm132 = vweird.f32 %v126
    %vm133 = vweird.f32 %v127
    %vm134 = vmor %vm132, %vm133
    %v135 = vsel %vm134, %v127, %v131
    %v136 = vand.u32 2147483647, %v126
    %vm137 = vcmp.eq.f32.partialorder %v136, 8.507059e+37
    %v138 = vand.u32 %v126, 2147483648
    %v139 = vor.u32 1.1754944e-38, %v138
    %v140 = vsel %vm137, %v139, %v135
    %v141 = vmul.f32 1.0, %v140
    %vm142 = vcmp.ge.f32.partialorder %v122, %v141
    %v143 = vsel %vm142, 1, 0
    %v144 = vcvt.s32.f32 %v143
    %145 = vst [vmem:[#allocation11] sm:$0xff] %v144
    %v146 = vld [vmem:[#allocation8] sm:$0xff]
    %v147 = vld [vmem:[#allocation8 + $0x8] sm:$0xff]
    %v148 = vld [vmem:[#allocation8 + $0x10] sm:$0xff]
    %v149 = vld [vmem:[#allocation8 + $0x18] sm:$0xff]
    %v150 = vld [vmem:[#allocation8 + $0x20] sm:$0xff]
    %v151 = vld [vmem:[#allocation8 + $0x28] sm:$0xff]
    %v152 = vld [vmem:[#allocation8 + $0x30] sm:$0xff]
    %v153 = vld [vmem:[#allocation8 + $0x38] sm:$0xff]
    %v154 = vld [vmem:[#allocation8 + $0x40] sm:$0xff]
    %v155 = vld [vmem:[#allocation8 + $0x48] sm:$0xff]
    %v156 = vld [vmem:[#allocation8 + $0x50] sm:$0xff]
    %v157 = vld [vmem:[#allocation8 + $0x58] sm:$0xff]
    %v158 = vld [vmem:[#allocation8 + $0x60] sm:$0xff]
    %v159 = vld [vmem:[#allocation8 + $0x68] sm:$0xff]
    %v160 = vld [vmem:[#allocation8 + $0x70] sm:$0xff]
    %v161 = vld [vmem:[#allocation8 + $0x78] sm:$0xff]
    %v162 = vperm.slane %v83, 1
    %163 = vmatpush.msra.mxu0 %v161
    %164 = vmatpush.msra.mxu0 %v160
    %165 = vmatpush.msra.mxu0 %v159
    %166 = vmatpush.msra.mxu0 %v158
    %167 = vmatpush.msra.mxu0 %v157
    %168 = vmatpush.msra.mxu0 %v156
    %169 = vmatpush.msra.mxu0 %v155
    %170 = vmatpush.msra.mxu0 %v154
    %171 = vmatpush.msra.mxu0 %v153
    %172 = vmatpush.msra.mxu0 %v152
    %173 = vmatpush.msra.mxu0 %v151
    %174 = vmatpush.msra.mxu0 %v150
    %175 = vmatpush.msra.mxu0 %v149
    %176 = vmatpush.msra.mxu0 %v148
    %177 = vmatpush.msra.mxu0 %v147
    %178 = vmatpush.msra.mxu0 %v146
    %179 = vmatmul.f32.gmra.mxu0 %v144
    %v180 = vpop.f32.mrf.mxu0
    %v181 = vadd.f32 %v162, %v180
    %182 = vdwg.mxu0
    %183 = vst [vmem:[#allocation10] sm:$0xff] %v181
    // Predicated region
    $region38: #{tpu_custom_call.1} parent=1 // pred_check
      _
    $region39: #{tpu_custom_call.1} parent=1 // pred_check_branch
      %185 = sbr.rel (0) target = $region41
    $region40: #{tpu_custom_call.1} parent=1 // pred_region
      %187 = vsyncadd [#allocation4], 0
      %s189 = sshll.u32 [#allocation10], 4
      %s190 = int_to_ptr.vmem [resolvable:$true] %s189
      %s191 = sshll.u32 %s5, 4
      %s192 = int_to_ptr.hbm [resolvable:$true] %s191
      %194 = dma.vmem_to_hbm [thread:$0]  %s190, 128, %s192, [#allocation4]
    $region41: #{tpu_custom_call.1} parent=1 // pred_fallthru
      _
    // Predicated region
    $region42: #{tpu_custom_call.1} parent=1 // pred_check
      _
    $region43: #{tpu_custom_call.1} parent=1 // pred_check_branch
      %196 = sbr.rel (0) target = $region45
    $region44: #{tpu_custom_call.1} parent=1 // pred_region
      %198 = vsyncadd [#allocation12], 0
      %s200 = sshll.u32 [#allocation11], 4
      %s201 = int_to_ptr.vmem [resolvable:$true] %s200
      %s202 = sshll.u32 %s6, 4
      %s203 = int_to_ptr.hbm [resolvable:$true] %s202
      %205 = dma.vmem_to_hbm [thread:$0]  %s201, 128, %s203, [#allocation12]
    $region45: #{tpu_custom_call.1} parent=1 // pred_fallthru
      _
    // Predicated region
    $region46: #{tpu_custom_call.1} parent=1 // pred_check
      _
    $region47: #{tpu_custom_call.1} parent=1 // pred_check_branch
      %207 = sbr.rel (0) target = $region49
    $region48: #{tpu_custom_call.1} parent=1 // pred_region
      %209 = dma.done [#allocation4], 128
    $region49: #{tpu_custom_call.1} parent=1 // pred_fallthru
      _
    // Predicated region
    $region50: #{tpu_custom_call.1} parent=1 // pred_check
      _
    $region51: #{tpu_custom_call.1} parent=1 // pred_check_branch
      %211 = sbr.rel (0) target = $region53
    $region52: #{tpu_custom_call.1} parent=1 // pred_region
      %213 = dma.done [#allocation12], 128
    $region53: #{tpu_custom_call.1} parent=1 // pred_fallthru
      _
    %214 = vsyncpa [#allocation3], 1
    %215 = vsyncpa [#allocation6], 1
    %216 = vsyncpa [#allocation9], 1
    %217 = vsyncpa [#allocation4], 1
    %218 = vsyncpa [#allocation12], 1

</llo_original>
